<compile_context>
chip_gen: v7x
topology: tpu7x:2x2x1
jax: 0.10.0
libtpu: 0.0.40
codegen_flags: <defaults>
</compile_context>

<pallas_src>
import jax
import jax.numpy as jnp
from jax.experimental import pallas as pl
from jax.experimental.pallas import tpu as pltpu


LANES = 128
# ~512K elements per block = 2 MiB f32 / 1 MiB bf16.
_TARGET_BLOCK_ELEMS = 512 * 1024
# Below this, splitting the grid buys less than the per-step overhead costs.
_MIN_SPLIT_ELEMS = 128 * 1024
# Ragged tensors are processed as a (1, n) slab; keep the lane block modest
# because a sublane-1 block may be sublane-padded in VMEM (worst case 8x).
_RAGGED_BLOCK_LANES = 64 * 1024


def _swish_kernel(beta_ref, x_ref, y_ref, j_ref):
    # beta_ref: (1, 1) f32 scalar in SMEM; x/y/j refs: VMEM tiles.
    beta = beta_ref[0, 0]
    x = x_ref[...].astype(jnp.float32)
    z = jax.nn.sigmoid(beta * x)
    y = x * z
    by = beta * y
    j = by + z * (1.0 - by)
    y_ref[...] = y.astype(y_ref.dtype)
    j_ref[...] = j.astype(j_ref.dtype)


def _round_up(a, b):
    return (a + b - 1) // b * b


def _row_align(dtype):
    # Sublane packing: f32 -> 8, bf16/f16 -> 16, int8/fp8 -> 32 rows.
    itemsize = jnp.dtype(dtype).itemsize
    return 8 * max(1, 4 // itemsize)


def _aligned_layout(n, dtype):
    """Layout for n % 128 == 0: returns (rows, w, row_tile, grid)."""
    w = LANES
    for cand in (2048, 1024, 512, 256):
        if n % cand == 0:
            w = cand
            break
    rows = n // w
    align = _row_align(dtype)
    tr_cap = max(align, (_TARGET_BLOCK_ELEMS // w) // align * align)
    if n < _MIN_SPLIT_ELEMS or rows <= align:
        # Tiny tensor: one block. Full-extent row dim is always legal even if
        # rows is not a multiple of the sublane packing.
        tr = rows if rows <= tr_cap else tr_cap
    else:
        # Aim for >= 4 row blocks so both v7x TensorCores get work and the
        # input/output DMAs overlap compute; never exceed the VMEM-sized cap.
        tr = min(tr_cap, _round_up(pl.cdiv(rows, 4), align))
    return rows, w, tr, (pl.cdiv(rows, tr),)


@jax.jit
def swish_forward(x, beta):
    """x: any-shape float array (e.g. NCHW), beta: scalar parameter (shape (1,))."""
    orig_shape = x.shape
    dtype = x.dtype

    flat = x.reshape(-1)  # free for the default row-major layout
    n = flat.shape[0]

    beta_smem = jnp.asarray(beta, jnp.float32).reshape(1, 1)

    if n % LANES == 0:
        # Zero-copy lane-dense 2D path; grid tiles the row (sublane) dim.
        rows, w, tr, grid = _aligned_layout(n, dtype)
        x2d = flat.reshape(rows, w)
        block = (tr, w)
        index_map = lambda i: (i, 0)
    else:
        # Zero-copy ragged path: (1, n) slab, grid tiles the lane dim.
        # Block lane extent is either the full array (always legal) or a
        # multiple of 128 with the trailing partial block masked by Pallas.
        rows, w = 1, n
        x2d = flat.reshape(1, n)
        bl = n if n <= _RAGGED_BLOCK_LANES else _RAGGED_BLOCK_LANES
        block = (1, bl)
        grid = (pl.cdiv(n, bl),)
        index_map = lambda i: (0, i)

    y2d, j2d = pl.pallas_call(
        _swish_kernel,
        out_shape=(
            jax.ShapeDtypeStruct((rows, w), dtype),
            jax.ShapeDtypeStruct((rows, w), dtype),
        ),
        grid_spec=pltpu.PrefetchScalarGridSpec(
            num_scalar_prefetch=0,
            grid=grid,
            in_specs=[
                pl.BlockSpec(memory_space=pltpu.SMEM),  # beta (whole, SMEM)
                pl.BlockSpec(block, index_map),         # x tile
            ],
            out_specs=[
                pl.BlockSpec(block, index_map),         # y tile
                pl.BlockSpec(block, index_map),         # j tile
            ],
        ),
        compiler_params=pltpu.CompilerParams(
            dimension_semantics=("parallel",),
            # > v5e's 16 MiB scoped default (legalizes 2 MiB blocks there),
            # << v7x's 64 MiB physical per-TC VMEM. Actual usage <= ~12 MiB.
            vmem_limit_bytes=32 * 1024 * 1024,
        ),
    )(beta_smem, x2d)

    return y2d.reshape(orig_shape), j2d.reshape(orig_shape)


def swish_reference(x, beta):
    b = jnp.asarray(beta, jnp.float32).reshape(())
    xf = x.astype(jnp.float32)
    z = jax.nn.sigmoid(b * xf)
    y = xf * z
    by = b * y
    j = by + z * (1.0 - by)
    return y.astype(x.dtype), j.astype(x.dtype)


if __name__ == "__main__":
    beta = jnp.array([0.8], dtype=jnp.float32)  # matches nn.Parameter([0.8])

    # 1) Primary: small NCHW f32 input, aligned flat length, single block.
    x = jax.random.normal(jax.random.PRNGKey(0), (2, 4, 16, 16), dtype=jnp.float32)
    y, j = swish_forward(x, beta)
    jax.block_until_ready((y, j))
    y_ref, j_ref = swish_reference(x, beta)
    assert y.shape == x.shape and j.shape == x.shape
    assert y.dtype == x.dtype and j.dtype == x.dtype
    assert jnp.allclose(y, y_ref, atol=1e-5, rtol=1e-5)
    assert jnp.allclose(j, j_ref, atol=1e-5, rtol=1e-5)

    # 2) Larger aligned tensor: exercises the multi-block "parallel" grid path.
    xl = jax.random.normal(jax.random.PRNGKey(3), (8, 16, 64, 64), dtype=jnp.float32)
    yl, jl = swish_forward(xl, beta)
    jax.block_until_ready((yl, jl))
    yl_ref, jl_ref = swish_reference(xl, beta)
    assert jnp.allclose(yl, yl_ref, atol=1e-5, rtol=1e-5)
    assert jnp.allclose(jl, jl_ref, atol=1e-5, rtol=1e-5)

    # 3) Awkward size: exercises the zero-copy ragged (1, n) path (no pad/slice).
    x2 = jax.random.normal(jax.random.PRNGKey(1), (2, 3, 17, 19), dtype=jnp.float32)
    y2, j2 = swish_forward(x2, beta)
    jax.block_until_ready((y2, j2))
    y2_ref, j2_ref = swish_reference(x2, beta)
    assert y2.shape == x2.shape and j2.shape == x2.shape
    assert jnp.allclose(y2, y2_ref, atol=1e-5, rtol=1e-5)
    assert jnp.allclose(j2, j2_ref, atol=1e-5, rtol=1e-5)

    # 4) bf16 storage path (compute in f32, store bf16).
    xb = jax.random.normal(jax.random.PRNGKey(2), (2, 4, 16, 16), dtype=jnp.bfloat16)
    yb, jb = swish_forward(xb, beta)
    jax.block_until_ready((yb, jb))
    yb_ref, jb_ref = swish_reference(xb, beta)
    assert yb.dtype == jnp.bfloat16 and jb.dtype == jnp.bfloat16
    assert jnp.allclose(yb.astype(jnp.float32), yb_ref.astype(jnp.float32),
                        atol=2e-2, rtol=2e-2)
    assert jnp.allclose(jb.astype(jnp.float32), jb_ref.astype(jnp.float32),
                        atol=2e-2, rtol=2e-2)

    print("KERNEL_OK")
</pallas_src>

<mosaic_0001>
module attributes {stable_mosaic.version = 11 : i64} {
  func.func @_swish_kernel(%arg0: i32, %arg1: memref<1x1xf32, #tpu.memory_space<smem>>, %arg2: memref<1x2048xf32, #tpu.memory_space<vmem>>, %arg3: memref<1x2048xf32, #tpu.memory_space<vmem>>, %arg4: memref<1x2048xf32, #tpu.memory_space<vmem>>) attributes {dimension_semantics = [#tpu.dimension_semantics<parallel>], iteration_bounds = array<i64: 1>, scalar_prefetch = 0 : i64, scratch_operands = 0 : i64, tpu.core_type = #tpu.core_type<tc>, window_params = [{transform_indices = @transform_0, window_bounds = array<i64: 1, 1>}, {transform_indices = @transform_1, window_bounds = array<i64: 1, 2048>}, {transform_indices = @transform_2, window_bounds = array<i64: 1, 2048>}, {transform_indices = @transform_3, window_bounds = array<i64: 1, 2048>}]} {
    %c0 = arith.constant 0 : index
    %c0_0 = arith.constant 0 : index
    %0 = memref.load %arg1[%c0, %c0_0] : memref<1x1xf32, #tpu.memory_space<smem>>
    %c0_1 = arith.constant 0 : index
    %c0_2 = arith.constant 0 : index
    %1 = vector.load %arg2[%c0_1, %c0_2] : memref<1x2048xf32, #tpu.memory_space<vmem>>, vector<1x2048xf32>
    %2 = vector.broadcast %0 : f32 to vector<1x2048xf32>
    %3 = arith.mulf %2, %1 : vector<1x2048xf32>
    %4 = arith.negf %3 : vector<1x2048xf32>
    %5 = math.exp %4 : vector<1x2048xf32>
    %cst = arith.constant 1.000000e+00 : f32
    %6 = vector.broadcast %cst : f32 to vector<1x2048xf32>
    %7 = arith.addf %6, %5 : vector<1x2048xf32>
    %8 = arith.divf %6, %7 : vector<1x2048xf32>
    %9 = arith.mulf %1, %8 : vector<1x2048xf32>
    %10 = vector.broadcast %0 : f32 to vector<1x2048xf32>
    %11 = arith.mulf %10, %9 : vector<1x2048xf32>
    %cst_3 = arith.constant 1.000000e+00 : f32
    %12 = vector.broadcast %cst_3 : f32 to vector<1x2048xf32>
    %13 = arith.subf %12, %11 : vector<1x2048xf32>
    %14 = arith.mulf %8, %13 : vector<1x2048xf32>
    %15 = arith.addf %11, %14 : vector<1x2048xf32>
    %c0_4 = arith.constant 0 : index
    %c0_5 = arith.constant 0 : index
    %16 = vector.load %arg3[%c0_4, %c0_5] : memref<1x2048xf32, #tpu.memory_space<vmem>>, vector<1x2048xf32>
    tpu.vector_store %arg3[%c0_4, %c0_5], %9 {strides = array<i32>} : memref<1x2048xf32, #tpu.memory_space<vmem>>, vector<1x2048xf32>,
    %c0_6 = arith.constant 0 : index
    %c0_7 = arith.constant 0 : index
    %17 = vector.load %arg4[%c0_6, %c0_7] : memref<1x2048xf32, #tpu.memory_space<vmem>>, vector<1x2048xf32>
    tpu.vector_store %arg4[%c0_6, %c0_7], %15 {strides = array<i32>} : memref<1x2048xf32, #tpu.memory_space<vmem>>, vector<1x2048xf32>,
    return
  }
  func.func @transform_0(%arg0: i32) -> (i32, i32) {
    %c0_i32 = arith.constant 0 : i32
    %c0_i32_0 = arith.constant 0 : i32
    %c0_i32_1 = arith.constant 0 : i32
    return %c0_i32, %c0_i32_0 : i32, i32
  }
  func.func @transform_1(%arg0: i32) -> (i32, i32) {
    %c0_i32 = arith.constant 0 : i32
    %c0_i32_0 = arith.constant 0 : i32
    return %arg0, %c0_i32 : i32, i32
  }
  func.func @transform_2(%arg0: i32) -> (i32, i32) {
    %c0_i32 = arith.constant 0 : i32
    %c0_i32_0 = arith.constant 0 : i32
    return %arg0, %c0_i32 : i32, i32
  }
  func.func @transform_3(%arg0: i32) -> (i32, i32) {
    %c0_i32 = arith.constant 0 : i32
    %c0_i32_0 = arith.constant 0 : i32
    return %arg0, %c0_i32 : i32, i32
  }
}

</mosaic_0001>

<llo_original>
// kernel: swish_forward.1
$region0: #{swish_forward.1}
  #allocation0 [shape = 'u32[]', space=smem, size = 0x4, offset = 0x4, fixed_abs, tag = 'smem constant byte address 0x4 - core index']
  #allocation1 [shape = 'u32[144,128]{1,0:T(1,128)}', space=vmem, size = 0x12000, scoped, tag = 'internal scratch']
  #allocation2 [shape = 'f32[1,1]{1,0:T(1,128)S(6)}', space=smem, size = 0x200, scoped, tag = 'scoped memory for swish_forward.1']
  %s0 = inlined_call_operand.<no memory space> [shape: f32[1,1], index: 0, kind: input, shape index: {}]
  %s1 = inlined_call_operand.vmem [shape: f32[1,2048], index: 1, kind: input, shape index: {}]
  %s2 = inlined_call_operand.vmem [shape: f32[1,2048], index: 2, kind: output, shape index: {0}]
  %s3 = inlined_call_operand.vmem [shape: f32[1,2048], index: 3, kind: output, shape index: {1}]
  %4 = xla_tuple %s2, %s3
  %s5 = sld [smem:[#allocation0]]
  $region26: #{swish_forward.1} parent=0
    _
  %s7 = ssub.s32 1, %s5
  %s8 = scalar_select 0, %s7, %s5
  %9 = sst [smem:[#allocation2]] %s0
  // Predicated region
  $region2: #{swish_forward.1} parent=0 // pred_check
    _
  $region3: #{swish_forward.1} parent=0 // pred_check_branch
    %11 = sbr.rel (0) target = $region5
  $region4: #{swish_forward.1} parent=0 // pred_region
    _
  $region5: #{swish_forward.1} parent=0 // pred_fallthru
    _
  // Predicated region
  $region6: #{swish_forward.1} parent=0 // pred_check
    _
  $region7: #{swish_forward.1} parent=0 // pred_check_branch
    %13 = sbr.rel (0) target = $region9
  $region8: #{swish_forward.1} parent=0 // pred_region
    _
  $region9: #{swish_forward.1} parent=0 // pred_fallthru
    _
  %s14 = sld [smem:[#allocation2]]
  %v15 = vld [vmem:[%s1] sm:$0xff]
  %v16 = vld [vmem:[%s1 + $0x8] sm:$0xff]
  %v17 = vstv %s14
  %v18 = vmul.f32 %v17, %v15
  %v19 = vmul.f32 %v17, %v16
  %v20 = vxor.u32 %v18, 2147483648
  %v21 = vxor.u32 %v19, 2147483648
  %v22 = vmul.f32 %v20, 1.442695
  %v23 = vpow.pop %v22
  %v24 = vmul.f32 %v21, 1.442695
  %v25 = vpow.pop %v24
  %v26 = vadd.f32 %v23, 1.0
  %v27 = vadd.f32 %v25, 1.0
  %v28 = vrcp.pop %v26
  %v29 = vmul.f32 1.0, %v28
  %v30 = vrcp.pop %v27
  %v31 = vmul.f32 1.0, %v30
  %v32 = vmul.f32 %v15, %v29
  %v33 = vmul.f32 %v16, %v31
  %v34 = vmul.f32 %v17, %v32
  %v35 = vmul.f32 %v17, %v33
  %v36 = vsub.f32 1.0, %v34
  %v37 = vsub.f32 1.0, %v35
  %v38 = vmul.f32 %v29, %v36
  %v39 = vmul.f32 %v31, %v37
  %v40 = vadd.f32 %v34, %v38
  %v41 = vadd.f32 %v35, %v39
  %42 = vst [vmem:[%s2] sm:$0xff] %v32
  %43 = vst [vmem:[%s2 + $0x8] sm:$0xff] %v33
  %44 = vst [vmem:[%s3] sm:$0xff] %v40
  %45 = vst [vmem:[%s3 + $0x8] sm:$0xff] %v41
  // Predicated region
  $region10: #{swish_forward.1} parent=0 // pred_check
    _
  $region11: #{swish_forward.1} parent=0 // pred_check_branch
    %47 = sbr.rel (0) target = $region13
  $region12: #{swish_forward.1} parent=0 // pred_region
    _
  $region13: #{swish_forward.1} parent=0 // pred_fallthru
    _
  // Predicated region
  $region14: #{swish_forward.1} parent=0 // pred_check
    _
  $region15: #{swish_forward.1} parent=0 // pred_check_branch
    %49 = sbr.rel (0) target = $region17
  $region16: #{swish_forward.1} parent=0 // pred_region
    _
  $region17: #{swish_forward.1} parent=0 // pred_fallthru
    _
  // Predicated region
  $region18: #{swish_forward.1} parent=0 // pred_check
    _
  $region19: #{swish_forward.1} parent=0 // pred_check_branch
    %51 = sbr.rel (0) target = $region21
  $region20: #{swish_forward.1} parent=0 // pred_region
    _
  $region21: #{swish_forward.1} parent=0 // pred_fallthru
    _
  // Predicated region
  $region22: #{swish_forward.1} parent=0 // pred_check
    _
  $region23: #{swish_forward.1} parent=0 // pred_check_branch
    %53 = sbr.rel (0) target = $region25
  $region24: #{swish_forward.1} parent=0 // pred_region
    _
  $region25: #{swish_forward.1} parent=0 // pred_fallthru
    _

</llo_original>
